<compile_context>
chip_gen: v5e
topology: v5e:2x2
jax: 0.10.0
libtpu: 0.0.40
codegen_flags: <defaults>
</compile_context>

<pallas_src>
import functools

import jax
import jax.numpy as jnp
from jax.experimental import pallas as pl
from jax.experimental.pallas import tpu as pltpu


def make_divisible(v, divisor, min_val=None):
    if min_val is None:
        min_val = divisor
    new_v = max(min_val, int(v + divisor / 2) // divisor * divisor)
    if new_v < 0.9 * v:
        new_v += divisor
    return new_v


# ---------------------------------------------------------------------------
# Budget helpers (chip-aware, conservative defaults).
# ---------------------------------------------------------------------------
def _vmem_limit_bytes():
    # Physical VMEM: 128 MiB on v5e/v6e, 64 MiB per TC on v7x.  Keep the scoped
    # limit at half the physical size (leaves compiler headroom everywhere).
    cap = 64 * 1024 * 1024  # conservative default if the query fails
    try:
        cap = int(pltpu.get_tpu_info().vmem_capacity_bytes)
    except Exception:
        pass
    if cap <= 64 * 1024 * 1024:
        return 32 * 1024 * 1024          # v7x-style small VMEM
    return 64 * 1024 * 1024              # v5e / v6e


def _block_budget_bytes(vmem_limit, elem_bytes):
    # Per-block byte budget.  A block is double-buffered for input and output
    # (4x) plus possibly one f32 temporary of the block (8/elem_bytes x).
    denom = 4 + max(1, 8 // int(elem_bytes))
    return min(8 * 1024 * 1024, vmem_limit // denom)


def _pick_batch_tile(n, slab_bytes, budget_bytes):
    best = 1
    for b in range(1, n + 1):
        if n % b == 0 and b * slab_bytes <= budget_bytes:
            best = b
    return best


def _pick_channel_tile(c, n):
    # Full-extent channels unless we need a second parallel grid axis for
    # megacore coverage at batch-1 (v7x has 2 TCs sharded via "parallel").
    if n >= 2 or c % 8 != 0 or c <= 8:
        return c
    for ct in range(c // 2, 7, -1):
        if c % ct == 0 and ct % 8 == 0:
            return ct
    return c


def _pick_spatial_tile(hw, rows_per_block, elem_bytes, budget_bytes):
    # Largest multiple-of-128 divisor of hw that fits the byte budget for
    # `rows_per_block` sublane rows; full extent as a legal fallback.
    if hw <= 128:
        return hw
    budget_lanes = max(128, budget_bytes // max(rows_per_block * elem_bytes, 1))
    t = min(hw, (budget_lanes // 128) * 128)
    while t >= 128:
        if hw % t == 0:
            return t
        t -= 128
    # TODO(synk): hw with no 128-divisible tile (e.g. 7x7=49, 56x56=3136) falls
    # back to the full extent -> masked lane stores; correctness is unaffected.
    return hw


def _pick_row_tile(rows, t_hw, elem_bytes, budget_bytes):
    budget_rows = max(8, budget_bytes // max(t_hw * elem_bytes, 1))
    r = min(rows, (budget_rows // 8) * 8)
    while r >= 8:
        if rows % r == 0:
            return r
        r -= 8
    return rows


# ---------------------------------------------------------------------------
# Fused kernel: pool + FCs + hsigmoid + rescale on a resident (B, C, HW) slab.
# ---------------------------------------------------------------------------
def _se_fused_kernel(x_ref, w1_ref, b1_ref, w2_ref, b2_ref, o_ref, *, inv_hw):
    x = x_ref[...]                                               # (B, C, HW)
    pooled = jnp.sum(x.astype(jnp.float32), axis=2) * inv_hw     # (B, C)
    # 1x1 "reduce" conv + bias, ReLU  (batched across the B images)
    h = jnp.dot(pooled, w1_ref[...], preferred_element_type=jnp.float32)
    h = jnp.maximum(h + b1_ref[...], 0.0)                        # (B, M)
    # 1x1 "expand" conv + bias, Hsigmoid = relu6(z + 3) / 6
    z = jnp.dot(h, w2_ref[...], preferred_element_type=jnp.float32) + b2_ref[...]
    z = jnp.clip(z + 3.0, 0.0, 6.0) * (1.0 / 6.0)                # (B, C)
    if x.dtype == jnp.bfloat16:
        o_ref[...] = x * z.astype(x.dtype)[:, :, None]
    else:
        o_ref[...] = (x.astype(jnp.float32) * z[:, :, None]).astype(o_ref.dtype)


# ---------------------------------------------------------------------------
# Fallback Pass 1: tiled spatial sum; C stays on the sublane axis.
# ---------------------------------------------------------------------------
def _se_pool_kernel(x_ref, s_ref):
    t = pl.program_id(2)

    @pl.when(t == 0)
    def _():
        s_ref[...] = jnp.zeros_like(s_ref)

    # (1, c_tile, t_hw) -> lane reduce only; no per-tile relayout.
    s_ref[...] += jnp.sum(x_ref[...].astype(jnp.float32), axis=2, keepdims=True)


# ---------------------------------------------------------------------------
# Fallback Pass 2: tiled element-wise rescale (HBM-bandwidth bound).
# ---------------------------------------------------------------------------
def _se_scale_kernel(x_ref, s_ref, o_ref):
    x = x_ref[...]                                               # (R, T)
    if x.dtype == jnp.bfloat16:
        o_ref[...] = x * s_ref[...].astype(x.dtype)
    else:
        o_ref[...] = (x.astype(jnp.float32) * s_ref[...]).astype(o_ref.dtype)


def se_layer(x, w_reduce, b_reduce, w_expand, b_expand):
    """SELayer forward.

    x: (N, C, H, W), any float dtype (kept end-to-end; math in f32 in-kernel).
    w_reduce: (num_mid, C)  -- Conv2d(channel, num_mid, 1) weight squeezed.
    w_expand: (C, num_mid)  -- Conv2d(num_mid, channel, 1) weight squeezed.
    """
    N, C, H, W = x.shape
    M = w_reduce.shape[0]
    HW = H * W
    dt = x.dtype
    elem_bytes = jnp.dtype(dt).itemsize
    inv_hw = 1.0 / float(HW)

    xr = x.reshape(N, C, HW)

    # Pre-transpose weights so matmuls are plain (B,C)@(C,M) / (B,M)@(M,C).
    w1 = jnp.transpose(w_reduce).astype(jnp.float32)            # (C, M)
    w2 = jnp.transpose(w_expand).astype(jnp.float32)            # (M, C)
    b1 = b_reduce.reshape(1, M).astype(jnp.float32)
    b2 = b_expand.reshape(1, C).astype(jnp.float32)

    vmem_limit = _vmem_limit_bytes()
    block_budget = _block_budget_bytes(vmem_limit, elem_bytes)
    slab_bytes = C * HW * elem_bytes

    # ------------------------------------------------------------------
    # Fused single-pass path: per-image slab fits the VMEM block budget.
    # ------------------------------------------------------------------
    if slab_bytes <= block_budget:
        B = _pick_batch_tile(N, slab_bytes, block_budget)
        out = pl.pallas_call(
            functools.partial(_se_fused_kernel, inv_hw=inv_hw),
            out_shape=jax.ShapeDtypeStruct((N, C, HW), dt),
            grid_spec=pltpu.PrefetchScalarGridSpec(
                num_scalar_prefetch=0,
                grid=(N // B,),
                in_specs=[
                    pl.BlockSpec((B, C, HW), lambda n: (n, 0, 0)),
                    pl.BlockSpec((C, M), lambda n: (0, 0)),     # resident weights
                    pl.BlockSpec((1, M), lambda n: (0, 0)),
                    pl.BlockSpec((M, C), lambda n: (0, 0)),
                    pl.BlockSpec((1, C), lambda n: (0, 0)),
                ],
                out_specs=pl.BlockSpec((B, C, HW), lambda n: (n, 0, 0)),
            ),
            compiler_params=pltpu.CompilerParams(
                dimension_semantics=("parallel",),
                vmem_limit_bytes=vmem_limit,
            ),
            cost_estimate=pl.CostEstimate(
                flops=int(2 * N * C * HW + 4 * N * C * M),
                transcendentals=0,
                bytes_accessed=int(2 * N * C * HW * elem_bytes
                                   + 4 * (2 * C * M + M + C)),
            ),
        )(xr, w1, b1, w2, b2)
        return out.reshape(N, C, H, W)

    # ------------------------------------------------------------------
    # Fallback two-pass path for slabs that don't fit a VMEM block.
    # ------------------------------------------------------------------
    # Pass 1: tiled spatial sums -> (N, C, 1) f32.
    c_tile = _pick_channel_tile(C, N)
    t_hw1 = _pick_spatial_tile(HW, c_tile, elem_bytes, block_budget)
    sums = pl.pallas_call(
        _se_pool_kernel,
        out_shape=jax.ShapeDtypeStruct((N, C, 1), jnp.float32),
        grid_spec=pltpu.PrefetchScalarGridSpec(
            num_scalar_prefetch=0,
            grid=(N, C // c_tile, HW // t_hw1),
            in_specs=[pl.BlockSpec((1, c_tile, t_hw1), lambda n, c, t: (n, c, t))],
            out_specs=pl.BlockSpec((1, c_tile, 1), lambda n, c, t: (n, c, 0)),
        ),
        compiler_params=pltpu.CompilerParams(
            dimension_semantics=("parallel", "parallel", "arbitrary"),
            vmem_limit_bytes=vmem_limit,
        ),
        cost_estimate=pl.CostEstimate(
            flops=int(N * C * HW),
            transcendentals=0,
            bytes_accessed=int(N * C * HW * elem_bytes + N * C * 4),
        ),
    )(xr)

    # Tiny FCs batched across all images in plain XLA (negligible FLOPs; keeps
    # the 1-row MXU matmuls off the Pallas pipeline's critical path).
    pooled = sums.reshape(N, C) * inv_hw
    h = jnp.maximum(pooled @ w1 + b1, 0.0)
    z = jnp.clip(h @ w2 + b2 + 3.0, 0.0, 6.0) * (1.0 / 6.0)     # (N, C) f32

    # Pass 2: lane-dense tiled rescale on (N*C, HW).
    rows = N * C
    x2 = xr.reshape(rows, HW)
    s2 = z.reshape(rows, 1)
    t_hw2 = _pick_spatial_tile(HW, 8, elem_bytes, block_budget)
    r_tile = _pick_row_tile(rows, t_hw2, elem_bytes, block_budget)

    out2 = pl.pallas_call(
        _se_scale_kernel,
        out_shape=jax.ShapeDtypeStruct((rows, HW), dt),
        grid_spec=pltpu.PrefetchScalarGridSpec(
            num_scalar_prefetch=0,
            grid=(rows // r_tile, HW // t_hw2),
            in_specs=[
                pl.BlockSpec((r_tile, t_hw2), lambda i, j: (i, j)),
                pl.BlockSpec((r_tile, 1), lambda i, j: (i, 0)),
            ],
            out_specs=pl.BlockSpec((r_tile, t_hw2), lambda i, j: (i, j)),
        ),
        compiler_params=pltpu.CompilerParams(
            dimension_semantics=("parallel", "parallel"),
            vmem_limit_bytes=vmem_limit,
        ),
        cost_estimate=pl.CostEstimate(
            flops=int(rows * HW),
            transcendentals=0,
            bytes_accessed=int(2 * rows * HW * elem_bytes + rows * 4),
        ),
    )(x2, s2)

    return out2.reshape(N, C, H, W)


def se_layer_ref(x, w_reduce, b_reduce, w_expand, b_expand):
    # Pure-JAX reference mirroring the PyTorch forward.
    y = x.mean(axis=3, keepdims=True).mean(axis=2, keepdims=True)   # (N, C, 1, 1)
    y = jnp.einsum('nchw,mc->nmhw', y, w_reduce) + b_reduce[None, :, None, None]
    y = jnp.maximum(y, 0.0)
    y = jnp.einsum('nmhw,cm->nchw', y, w_expand) + b_expand[None, :, None, None]
    y = jnp.clip(y + 3.0, 0.0, 6.0) / 6.0
    return x * y


if __name__ == "__main__":
    # Module hyperparams (SELayer defaults).
    channel = 4
    reduction = 4                                              # SELayer.REDUCTION
    num_mid = make_divisible(channel // reduction, divisor=8)  # -> 8

    key = jax.random.PRNGKey(0)
    kx, k1, k2, k3, k4 = jax.random.split(key, 5)

    N, C, H, W = 2, channel, 16, 16
    x = jax.random.normal(kx, (N, C, H, W), dtype=jnp.float32)

    w_reduce = 0.1 * jax.random.normal(k1, (num_mid, C), dtype=jnp.float32)
    b_reduce = 0.1 * jax.random.normal(k2, (num_mid,), dtype=jnp.float32)
    w_expand = 0.1 * jax.random.normal(k3, (C, num_mid), dtype=jnp.float32)
    b_expand = 0.1 * jax.random.normal(k4, (C,), dtype=jnp.float32)

    out = se_layer(x, w_reduce, b_reduce, w_expand, b_expand)
    out = jax.block_until_ready(out)

    ref = se_layer_ref(x, w_reduce, b_reduce, w_expand, b_expand)
    assert out.shape == (N, C, H, W)
    assert jnp.allclose(out, ref, atol=1e-5, rtol=1e-5), "mismatch vs reference"

    print("KERNEL_OK")
</pallas_src>

<mosaic_0001>
module attributes {stable_mosaic.version = 11 : i64} {
  func.func @_se_fused_kernel(%arg0: i32, %arg1: memref<2x4x256xf32, #tpu.memory_space<vmem>>, %arg2: memref<4x8xf32, #tpu.memory_space<vmem>>, %arg3: memref<1x8xf32, #tpu.memory_space<vmem>>, %arg4: memref<8x4xf32, #tpu.memory_space<vmem>>, %arg5: memref<1x4xf32, #tpu.memory_space<vmem>>, %arg6: memref<2x4x256xf32, #tpu.memory_space<vmem>>) attributes {dimension_semantics = [#tpu.dimension_semantics<parallel>], iteration_bounds = array<i64: 1>, scalar_prefetch = 0 : i64, scratch_operands = 0 : i64, tpu.core_type = #tpu.core_type<tc>, window_params = [{transform_indices = @transform_0, window_bounds = array<i64: 2, 4, 256>}, {pipeline_mode = #tpu.pipeline_mode<synchronous>, transform_indices = @transform_1, window_bounds = array<i64: 4, 8>}, {pipeline_mode = #tpu.pipeline_mode<synchronous>, transform_indices = @transform_2, window_bounds = array<i64: 1, 8>}, {pipeline_mode = #tpu.pipeline_mode<synchronous>, transform_indices = @transform_3, window_bounds = array<i64: 8, 4>}, {pipeline_mode = #tpu.pipeline_mode<synchronous>, transform_indices = @transform_4, window_bounds = array<i64: 1, 4>}, {transform_indices = @transform_5, window_bounds = array<i64: 2, 4, 256>}]} {
    %c0 = arith.constant 0 : index
    %c0_0 = arith.constant 0 : index
    %c0_1 = arith.constant 0 : index
    %0 = vector.load %arg1[%c0, %c0_0, %c0_1] : memref<2x4x256xf32, #tpu.memory_space<vmem>>, vector<2x4x256xf32>
    %cst = arith.constant dense<0.000000e+00> : vector<2x4xf32>
    %1 = vector.multi_reduction <add>, %0, %cst [2] : vector<2x4x256xf32> to vector<2x4xf32>
    %cst_2 = arith.constant 3.906250e-03 : f32
    %2 = vector.broadcast %cst_2 : f32 to vector<2x4xf32>
    %3 = arith.mulf %1, %2 : vector<2x4xf32>
    %c0_3 = arith.constant 0 : index
    %c0_4 = arith.constant 0 : index
    %4 = vector.load %arg2[%c0_3, %c0_4] : memref<4x8xf32, #tpu.memory_space<vmem>>, vector<4x8xf32>
    %cst_5 = arith.constant dense<0.000000e+00> : vector<2x8xf32>
    %5 = tpu.matmul %3, %4, %cst_5 {dimension_numbers = #tpu.dot_dimension_numbers<[1], [0], [0], [1], [0, 0, 1, 1], [], []>} : vector<2x4xf32>, vector<4x8xf32>, vector<2x8xf32> -> vector<2x8xf32>
    %c0_6 = arith.constant 0 : index
    %c0_7 = arith.constant 0 : index
    %6 = vector.load %arg3[%c0_6, %c0_7] : memref<1x8xf32, #tpu.memory_space<vmem>>, vector<1x8xf32>
    %7 = vector.broadcast %6 : vector<1x8xf32> to vector<2x8xf32>
    %8 = arith.addf %5, %7 : vector<2x8xf32>
    %cst_8 = arith.constant 0.000000e+00 : f32
    %9 = vector.broadcast %cst_8 : f32 to vector<2x8xf32>
    %10 = arith.maximumf %8, %9 : vector<2x8xf32>
    %c0_9 = arith.constant 0 : index
    %c0_10 = arith.constant 0 : index
    %11 = vector.load %arg4[%c0_9, %c0_10] : memref<8x4xf32, #tpu.memory_space<vmem>>, vector<8x4xf32>
    %cst_11 = arith.constant dense<0.000000e+00> : vector<2x4xf32>
    %12 = tpu.matmul %10, %11, %cst_11 {dimension_numbers = #tpu.dot_dimension_numbers<[1], [0], [0], [1], [0, 0, 1, 1], [], []>} : vector<2x8xf32>, vector<8x4xf32>, vector<2x4xf32> -> vector<2x4xf32>
    %c0_12 = arith.constant 0 : index
    %c0_13 = arith.constant 0 : index
    %13 = vector.load %arg5[%c0_12, %c0_13] : memref<1x4xf32, #tpu.memory_space<vmem>>, vector<1x4xf32>
    %14 = vector.broadcast %13 : vector<1x4xf32> to vector<2x4xf32>
    %15 = arith.addf %12, %14 : vector<2x4xf32>
    %cst_14 = arith.constant 3.000000e+00 : f32
    %16 = vector.broadcast %cst_14 : f32 to vector<2x4xf32>
    %17 = arith.addf %15, %16 : vector<2x4xf32>
    %cst_15 = arith.constant 0.000000e+00 : f32
    %cst_16 = arith.constant 6.000000e+00 : f32
    %18 = vector.broadcast %cst_15 : f32 to vector<2x4xf32>
    %19 = arith.maximumf %18, %17 : vector<2x4xf32>
    %20 = vector.broadcast %cst_16 : f32 to vector<2x4xf32>
    %21 = arith.minimumf %20, %19 : vector<2x4xf32>
    %cst_17 = arith.constant 0.166666672 : f32
    %22 = vector.broadcast %cst_17 : f32 to vector<2x4xf32>
    %23 = arith.mulf %21, %22 : vector<2x4xf32>
    %24 = vector.shape_cast %23 : vector<2x4xf32> to vector<2x4x1xf32>
    %25 = vector.broadcast %24 : vector<2x4x1xf32> to vector<2x4x256xf32>
    %26 = arith.mulf %0, %25 : vector<2x4x256xf32>
    %c0_18 = arith.constant 0 : index
    %c0_19 = arith.constant 0 : index
    %c0_20 = arith.constant 0 : index
    %27 = vector.load %arg6[%c0_18, %c0_19, %c0_20] : memref<2x4x256xf32, #tpu.memory_space<vmem>>, vector<2x4x256xf32>
    tpu.vector_store %arg6[%c0_18, %c0_19, %c0_20], %26 {strides = array<i32>} : memref<2x4x256xf32, #tpu.memory_space<vmem>>, vector<2x4x256xf32>,
    return
  }
  func.func @transform_0(%arg0: i32) -> (i32, i32, i32) {
    %c0_i32 = arith.constant 0 : i32
    %c0_i32_0 = arith.constant 0 : i32
    %c0_i32_1 = arith.constant 0 : i32
    return %arg0, %c0_i32, %c0_i32_0 : i32, i32, i32
  }
  func.func @transform_1(%arg0: i32) -> (i32, i32) {
    %c0_i32 = arith.constant 0 : i32
    %c0_i32_0 = arith.constant 0 : i32
    %c0_i32_1 = arith.constant 0 : i32
    return %c0_i32, %c0_i32_0 : i32, i32
  }
  func.func @transform_2(%arg0: i32) -> (i32, i32) {
    %c0_i32 = arith.constant 0 : i32
    %c0_i32_0 = arith.constant 0 : i32
    %c0_i32_1 = arith.constant 0 : i32
    return %c0_i32, %c0_i32_0 : i32, i32
  }
  func.func @transform_3(%arg0: i32) -> (i32, i32) {
    %c0_i32 = arith.constant 0 : i32
    %c0_i32_0 = arith.constant 0 : i32
    %c0_i32_1 = arith.constant 0 : i32
    return %c0_i32, %c0_i32_0 : i32, i32
  }
  func.func @transform_4(%arg0: i32) -> (i32, i32) {
    %c0_i32 = arith.constant 0 : i32
    %c0_i32_0 = arith.constant 0 : i32
    %c0_i32_1 = arith.constant 0 : i32
    return %c0_i32, %c0_i32_0 : i32, i32
  }
  func.func @transform_5(%arg0: i32) -> (i32, i32, i32) {
    %c0_i32 = arith.constant 0 : i32
    %c0_i32_0 = arith.constant 0 : i32
    %c0_i32_1 = arith.constant 0 : i32
    return %arg0, %c0_i32, %c0_i32_0 : i32, i32, i32
  }
}

</mosaic_0001>

<llo_original>
// kernel: tpu_custom_call.1
$region0: #{tpu_custom_call.1}
  #allocation0 [shape = 'u32[]', space=smem, size = 0x4, offset = 0x4, fixed_abs, tag = 'smem constant byte address 0x4 - core index']
  #allocation1 [shape = 'u32[72,128]{1,0:T(1,128)}', space=vmem, size = 0x9000, scoped, tag = 'internal scratch']
  %s0 = inlined_call_operand.hbm [shape: f32[2,4,256], index: 0, kind: input, shape index: {}]
  %s1 = inlined_call_operand.vmem [shape: f32[4,8], index: 1, kind: input, shape index: {}]
  %s2 = inlined_call_operand.vmem [shape: f32[1,8], index: 2, kind: input, shape index: {}]
  %s3 = inlined_call_operand.vmem [shape: f32[8,4], index: 3, kind: input, shape index: {}]
  %s4 = inlined_call_operand.vmem [shape: f32[1,4], index: 4, kind: input, shape index: {}]
  %s5 = inlined_call_operand.hbm [shape: f32[2,4,256], index: 5, kind: output, shape index: {}]
  %s6 = sld [smem:[#allocation0]]
  $region34: #{tpu_custom_call.1} parent=0
    _
  %s8 = ssub.s32 1, %s6
  %s9 = scalar_select 0, %s8, %s6
  $region1: #{tpu_custom_call.1} parent=0
    #allocation2 [shape = 'u8[8192]{0}', space=vmem, size = 0x2000, scoped, tag = 'input window, operand 0, single buffered']
    #allocation3 [shape = 's32[1]{0}', space=sflag, size = 0x4, scoped, tag = 'scoped memory for tpu_custom_call.1']
    #allocation4 [shape = 's32[1]{0}', space=sflag, size = 0x4, scoped, tag = 'scoped memory for tpu_custom_call.1']
    #allocation5 [shape = 'u8[8192]{0}', space=vmem, size = 0x2000, scoped, tag = 'output window, operand 0, single buffered']
    %10 = vsyncpa [#allocation3], 0
    %11 = vsyncpa [#allocation4], 0
    // Predicated region
    $region2: #{tpu_custom_call.1} parent=1 // pred_check
      _
    $region3: #{tpu_custom_call.1} parent=1 // pred_check_branch
      %13 = sbr.rel (0) target = $region5
    $region4: #{tpu_custom_call.1} parent=1 // pred_region
      %15 = vsyncadd [#allocation3], 0
      %s16 = sshll.u32 %s0, 4
      %s17 = int_to_ptr.hbm [resolvable:$true] %s16
      %s18 = sshll.u32 [#allocation2], 4
      %s19 = int_to_ptr.vmem [resolvable:$true] %s18
      %24 = dma.hbm_to_vmem [thread:$0]  %s17, 256, %s19, [#allocation3], 128, 128, 8
    $region5: #{tpu_custom_call.1} parent=1 // pred_fallthru
      _
    // Predicated region
    $region6: #{tpu_custom_call.1} parent=1 // pred_check
      _
    $region7: #{tpu_custom_call.1} parent=1 // pred_check_branch
      %26 = sbr.rel (0) target = $region9
    $region8: #{tpu_custom_call.1} parent=1 // pred_region
      _
    $region9: #{tpu_custom_call.1} parent=1 // pred_fallthru
      _
    // Predicated region
    $region10: #{tpu_custom_call.1} parent=1 // pred_check
      _
    $region11: #{tpu_custom_call.1} parent=1 // pred_check_branch
      %28 = sbr.rel (0) target = $region13
    $region12: #{tpu_custom_call.1} parent=1 // pred_region
      _
    $region13: #{tpu_custom_call.1} parent=1 // pred_fallthru
      _
    // Predicated region
    $region14: #{tpu_custom_call.1} parent=1 // pred_check
      _
    $region15: #{tpu_custom_call.1} parent=1 // pred_check_branch
      %30 = sbr.rel (0) target = $region17
    $region16: #{tpu_custom_call.1} parent=1 // pred_region
      _
    $region17: #{tpu_custom_call.1} parent=1 // pred_fallthru
      _
    // Predicated region
    $region18: #{tpu_custom_call.1} parent=1 // pred_check
      _
    $region19: #{tpu_custom_call.1} parent=1 // pred_check_branch
      %32 = sbr.rel (0) target = $region21
    $region20: #{tpu_custom_call.1} parent=1 // pred_region
      _
    $region21: #{tpu_custom_call.1} parent=1 // pred_fallthru
      _
    // Predicated region
    $region22: #{tpu_custom_call.1} parent=1 // pred_check
      _
    $region23: #{tpu_custom_call.1} parent=1 // pred_check_branch
      %34 = sbr.rel (0) target = $region25
    $region24: #{tpu_custom_call.1} parent=1 // pred_region
      %36 = dma.done [#allocation3], 256
    $region25: #{tpu_custom_call.1} parent=1 // pred_fallthru
      _
    %v37 = vld [vmem:[#allocation2] sm:$0xff]
    %v38 = vld [vmem:[#allocation2 + $0x8] sm:$0xff]
    %41 = vst [vmem:[#allocation1] ss:$2 sm:$0xff] %v37
    %v42 = vld.sshfl [vmem:[#allocation1] sm:$0xff pattern:$0x75316420]
    %v43 = vld.sshfl [vmem:[#allocation1 + $0x8] sm:$0xff pattern:$0x75316420]
    %s44 = scalar_lea.vmem [#allocation1], 16
    %45 = vst [vmem:[%s44] ss:$2 sm:$0xff] %v38
    %v46 = vld.sshfl [vmem:[#allocation1 + $0x10] sm:$0xff pattern:$0x75316420]
    %v47 = vld.sshfl [vmem:[#allocation1 + $0x18] sm:$0xff pattern:$0x75316420]
    %vm52 = vcmask 1043456
    %v53 = vsel %vm52, %v42, 0.0
    %v54 = vsel %vm52, %v43, 0.0
    %v55 = vadd.f32 %v53, %v54
    %56 = vadd.xlane.f32.xlu0 %v55
    %v57 = vpop.xlane.xlu0 %56
    %v58 = vsel %vm52, %v46, 0.0
    %v59 = vsel %vm52, %v47, 0.0
    %v60 = vadd.f32 %v58, %v59
    %61 = vadd.xlane.f32.xlu0 %v60
    %v62 = vpop.xlane.xlu0 %61
    %v63 = vmul.f32 %v57, 0.00390625
    %v64 = vmul.f32 %v62, 0.00390625
    %v65 = vld [vmem:[%s1] sm:$0xf]
    %v66 = vld [vmem:[%s2] sm:$0x1]
    %v68 = vperm.slane %v66, 0
    %v72 = vlaneseq
    %v73 = vand.u32 %v72, 127
    %v74 = vperm.slane %v63, %v73
    %v75 = vperm.slane %v64, %v73
    %vm76 = vcmask 1041409
    %v77 = vsel %vm76, %v75, %v74
    %vm78 = vcmask 31744
    %v79 = vsel %vm78, %v77, 0
    %v82 = vsel %vm52, %v65, 0
    %84 = vmatpush.msra.mxu0 0.0
    %85 = vmatpush.msra.mxu0 0.0
    %86 = vmatpush.msra.mxu0 0.0
    %87 = vmatpush.msra.mxu0 0.0
    %88 = vmatpush.msra.mxu0 0.0
    %89 = vmatpush.msra.mxu0 0.0
    %90 = vmatpush.msra.mxu0 0.0
    %91 = vmatpush.msra.mxu0 0.0
    %92 = vmatpush.msra.mxu0 0.0
    %93 = vmatpush.msra.mxu0 0.0
    %94 = vmatpush.msra.mxu0 0.0
    %95 = vmatpush.msra.mxu0 0.0
    %96 = vmatpush.msra.mxu0 0.0
    %97 = vmatpush.msra.mxu0 0.0
    %98 = vmatpush.msra.mxu0 0.0
    %99 = vmatpush.msra.mxu0 %v82
    %100 = vmatmul.f32.gmra.mxu0 %v79
    %v101 = vpop.f32.mrf.mxu0
    %v102 = vadd.f32 %v68, %v101
    %103 = vdwg.mxu0
    %v104 = vmax.f32 %v102, 0.0
    %v105 = vld [vmem:[%s3] sm:$0xff]
    %v106 = vld [vmem:[%s4] sm:$0x1]
    %v108 = vperm.slane %v106, 0
    %vm110 = vcmask 64512
    %v112 = vsel %vm110, %v104, 0
    %114 = vmatpush.msra.mxu0 0.0
    %115 = vmatpush.msra.mxu0 0.0
    %116 = vmatpush.msra.mxu0 0.0
    %117 = vmatpush.msra.mxu0 0.0
    %118 = vmatpush.msra.mxu0 0.0
    %119 = vmatpush.msra.mxu0 0.0
    %120 = vmatpush.msra.mxu0 0.0
    %121 = vmatpush.msra.mxu0 0.0
    %122 = vmatpush.msra.mxu0 0.0
    %123 = vmatpush.msra.mxu0 0.0
    %124 = vmatpush.msra.mxu0 0.0
    %125 = vmatpush.msra.mxu0 0.0
    %126 = vmatpush.msra.mxu0 0.0
    %127 = vmatpush.msra.mxu0 0.0
    %128 = vmatpush.msra.mxu0 0.0
    %129 = vmatpush.msra.mxu0 %v105
    %130 = vmatmul.f32.gmra.mxu0 %v112
    %v131 = vpop.f32.mrf.mxu0
    %v132 = vadd.f32 %v108, %v131
    %133 = vdwg.mxu0
    %v134 = vadd.f32 %v132, 3.0
    %v135 = vmax.f32 %v134, 0.0
    %v136 = vmin.f32 %v135, 6.0
    %v137 = vmul.f32 %v136, 0.16666667
    %v138 = vperm.slane %v137, 0
    %v139 = vlaneseq
    %v140 = vshrl.u32 %v139, 7
    %142 = vset.pattern.permute.xlu0 %v140
    %143 = vperm.xlu0 %142, %v138
    %v144 = vpop.permute.xlu0 %143
    %v145 = vperm.slane %v137, 1
    %v146 = vlaneseq
    %v147 = vshrl.u32 %v146, 7
    %149 = vset.pattern.permute.xlu0 %v147
    %150 = vperm.xlu0 %149, %v145
    %v151 = vpop.permute.xlu0 %150
    %v155 = vunpack.c.l.s4 839922192
    %v156 = vunpack.c.0.s8 %v155
    %v157 = vperm.slane %v144, %v156
    %v159 = vunpack.c.l.s4 839922192
    %v160 = vunpack.c.0.s8 %v159
    %v161 = vperm.slane %v151, %v160
    %v164 = vmul.f32 %v37, %v157
    %v165 = vmul.f32 %v38, %v161
    %166 = vst [vmem:[#allocation5] sm:$0xff] %v164
    %167 = vst [vmem:[#allocation5 + $0x8] sm:$0xff] %v165
    // Predicated region
    $region26: #{tpu_custom_call.1} parent=1 // pred_check
      _
    $region27: #{tpu_custom_call.1} parent=1 // pred_check_branch
      %169 = sbr.rel (0) target = $region29
    $region28: #{tpu_custom_call.1} parent=1 // pred_region
      %171 = vsyncadd [#allocation4], 0
      %s172 = sshll.u32 [#allocation5], 4
      %s173 = int_to_ptr.vmem [resolvable:$true] %s172
      %s174 = sshll.u32 %s5, 4
      %s175 = int_to_ptr.hbm [resolvable:$true] %s174
      %180 = dma.vmem_to_hbm [thread:$0]  %s173, 256, %s175, [#allocation4], 128, 128, 8
    $region29: #{tpu_custom_call.1} parent=1 // pred_fallthru
      _
    // Predicated region
    $region30: #{tpu_custom_call.1} parent=1 // pred_check
      _
    $region31: #{tpu_custom_call.1} parent=1 // pred_check_branch
      %182 = sbr.rel (0) target = $region33
    $region32: #{tpu_custom_call.1} parent=1 // pred_region
      %184 = dma.done [#allocation4], 256
    $region33: #{tpu_custom_call.1} parent=1 // pred_fallthru
      _
    %185 = vsyncpa [#allocation3], 1
    %186 = vsyncpa [#allocation4], 1

</llo_original>
